<compile_context>
chip_gen: v6e
topology: v6e:2x2x1
jax: 0.10.0
libtpu: 0.0.40
codegen_flags: <defaults>
</compile_context>

<pallas_src>
import jax
import jax.numpy as jnp
import numpy as np
from jax.experimental import pallas as pl
from jax.experimental.pallas import tpu as pltpu

# ---------------- config (small synthetic shapes) ----------------
B       = 2                                # batch
C_IN    = 3                                # encoder input channels
IMG     = 16                               # img_size (small)
KSTRIDE = 4                                # patchify conv: kernel == stride
HIDDEN  = 8                                # conv output channels
Z_DIM   = 16                               # latent dim
P       = (IMG // KSTRIDE) ** 2            # patches per image (16)
CKK     = C_IN * KSTRIDE * KSTRIDE         # patch feature size (48)
H1, H2  = 64, 64                           # sptm MLP widths
LANE    = 128                              # lane pad width
CHW     = C_IN * IMG * IMG                 # flattened image size (768, = 6*128 lanes)
PH      = P * HIDDEN                       # conv activation width (128)

# -------- packed weight-slab row offsets (all multiples of 128) --------
ROW_WBIG   = 0
ROW_PFC_LO = ROW_WBIG + CHW                # 768
ROW_PFC_HI = ROW_PFC_LO + PH               # 896
ROW_W1     = ROW_PFC_HI + PH               # 1024
ROW_W2     = ROW_W1 + LANE                 # 1152
ROW_W3     = ROW_W2 + LANE                 # 1280
SLAB_ROWS  = ROW_W3 + LANE                 # 1408


# ---------------- fused Pallas kernel (single launch, no grid) ----------------
def fused_kernel(x_ref, xn_ref, w_ref, b_ref, out_ref):
    """Whole Classifier forward for the full batch in one shot.

    x_ref  : (B, CHW)        f32  flattened x      (NCHW row-major flatten)
    xn_ref : (B, CHW)        f32  flattened x_next
    w_ref  : (SLAB_ROWS,128) bf16 packed weights (static slices below)
    b_ref  : (8, 128)        f32  packed bias rows
    out_ref: (B, 128)        f32  logit in column 0, zeros elsewhere
    """
    f32 = jnp.float32
    bf16 = jnp.bfloat16

    # --- static, zero-cost carve-up of the packed weight slab ---
    w_big  = w_ref[ROW_WBIG:ROW_PFC_LO, :]       # (768,128) conv w/ im2col folded in
    pfc_lo = w_ref[ROW_PFC_LO:ROW_PFC_HI, :]     # avg-pool + fc, lands z   in lanes 0:16
    pfc_hi = w_ref[ROW_PFC_HI:ROW_W1, :]         # avg-pool + fc, lands z_n in lanes 64:80
    w1     = w_ref[ROW_W1:ROW_W2, :]             # head layer 1 (rows 0:16 = w1a, 64:80 = w1b)
    w2     = w_ref[ROW_W2:ROW_W3, :]             # head layer 2
    w3     = w_ref[ROW_W3:SLAB_ROWS, :]          # head layer 3 (col 0 = logit)

    b_conv = b_ref[0:1, :]                       # (1,128) f32 biases, broadcast over rows
    b_fc   = b_ref[1:2, :]
    b1     = b_ref[2:3, :]
    b2     = b_ref[3:4, :]
    b3     = b_ref[4:5, :]

    # --- synthetic encoder: conv(+im2col) as one matmul per image stream ---
    xb  = x_ref[...].astype(bf16)                # bf16 MXU operands, f32 accumulate
    xnb = xn_ref[...].astype(bf16)
    hx = jnp.maximum(jnp.dot(xb,  w_big, preferred_element_type=f32) + b_conv, 0.0)  # (B,128)
    hn = jnp.maximum(jnp.dot(xnb, w_big, preferred_element_type=f32) + b_conv, 0.0)  # (B,128)

    # --- global avg pool + fc + [z ; z_next] concat, all lane-packed in one tile ---
    zcat = (jnp.dot(hx.astype(bf16), pfc_lo, preferred_element_type=f32)
            + jnp.dot(hn.astype(bf16), pfc_hi, preferred_element_type=f32)
            + b_fc)                                                                   # (B,128)

    # --- 'sptm' head: Linear(2Z,64) -> ReLU -> Linear(64,64) -> ReLU -> Linear(64,1) ---
    h1 = jnp.maximum(jnp.dot(zcat.astype(bf16), w1, preferred_element_type=f32) + b1, 0.0)
    h2 = jnp.maximum(jnp.dot(h1.astype(bf16),   w2, preferred_element_type=f32) + b2, 0.0)
    out = jnp.dot(h2.astype(bf16), w3, preferred_element_type=f32) + b3               # (B,128)
    out_ref[...] = out.astype(out_ref.dtype)


# ---------------- parameter packing (done ONCE, outside the jit hot path) ----------------
def prepare_params(params):
    """Build the packed bf16 weight slab and f32 bias block.

    The im2col selection is folded into the conv weight (W_big), the average
    pool is folded into the encoder fc (pool_fc), and the [z ; z_next] concat
    is folded into lane-shifted pool_fc copies + a packed W1.  All padding
    lanes/rows are exactly zero, so padded lanes stay zero through ReLU and
    subsequent matmuls; only column 0 of the output carries the logit.
    """
    L = LANE

    # --- im2col selection folded into the conv weight: W_big (CHW, P*HIDDEN) ---
    c, h, w = np.meshgrid(np.arange(C_IN), np.arange(IMG), np.arange(IMG), indexing="ij")
    m = ((c * IMG + h) * IMG + w).ravel()                                  # flat pixel index
    p = ((h // KSTRIDE) * (IMG // KSTRIDE) + (w // KSTRIDE)).ravel()       # owning patch
    f = ((c * KSTRIDE + (h % KSTRIDE)) * KSTRIDE + (w % KSTRIDE)).ravel()  # patch feature
    S = np.zeros((CHW, P, CKK), np.float32)
    S[m, p, f] = 1.0
    w_conv = np.asarray(params["w_conv"], np.float32)                      # (CKK, HIDDEN)
    w_big = np.einsum("mpf,fo->mpo", S, w_conv).reshape(CHW, PH)           # (768, 128)

    b_conv_t = np.tile(np.asarray(params["b_conv"], np.float32), (1, P))   # (1, 128)

    # --- global average pool fused with encoder fc ---
    Q = np.zeros((PH, HIDDEN), np.float32)
    Q[np.arange(PH), np.arange(PH) % HIDDEN] = 1.0 / P                     # mean over patches
    pool_fc = Q @ np.asarray(params["w_fc"], np.float32)                   # (128, Z_DIM)
    pfc_lo = np.zeros((PH, L), np.float32); pfc_lo[:, :Z_DIM] = pool_fc            # z   -> lanes 0:16
    pfc_hi = np.zeros((PH, L), np.float32); pfc_hi[:, 64:64 + Z_DIM] = pool_fc     # z_n -> lanes 64:80
    b_fc = np.asarray(params["b_fc"], np.float32)[0]
    b_fc_cat = np.zeros((1, L), np.float32)
    b_fc_cat[0, :Z_DIM] = b_fc
    b_fc_cat[0, 64:64 + Z_DIM] = b_fc

    # --- head weights, packed/padded to (128, 128) ---
    w1 = np.zeros((L, L), np.float32)
    w1[:Z_DIM, :H1] = np.asarray(params["w1a"], np.float32)
    w1[64:64 + Z_DIM, :H1] = np.asarray(params["w1b"], np.float32)
    b1 = np.zeros((1, L), np.float32); b1[0, :H1] = np.asarray(params["b1"], np.float32)[0]

    w2 = np.zeros((L, L), np.float32); w2[:H1, :H2] = np.asarray(params["w2"], np.float32)
    b2 = np.zeros((1, L), np.float32); b2[0, :H2] = np.asarray(params["b2"], np.float32)[0]

    w3 = np.zeros((L, L), np.float32); w3[:H2, :1] = np.asarray(params["w3"], np.float32)
    b3 = np.zeros((1, L), np.float32); b3[0, :1] = np.asarray(params["b3"], np.float32)[0]

    w_slab = np.concatenate([w_big, pfc_lo, pfc_hi, w1, w2, w3], axis=0)   # (1408, 128)
    assert w_slab.shape == (SLAB_ROWS, L)
    biases = np.concatenate([b_conv_t, b_fc_cat, b1, b2, b3,
                             np.zeros((3, L), np.float32)], axis=0)        # (8, 128)

    return {
        "w_slab": jnp.asarray(w_slab, jnp.bfloat16),   # bf16 MXU operands
        "biases": jnp.asarray(biases, jnp.float32),    # f32 epilogue
    }


# ---------------- wrapper ----------------
def classifier_forward(prepared, x, x_next, o_cond=None):
    # TODO(synk): o_cond (conditional context) is encoder-specific; the synthetic
    # encoder ignores it, matching the unconditional code path.
    x_flat = x.reshape(B, CHW)          # free row-major flatten, no im2col kernel
    xn_flat = x_next.reshape(B, CHW)

    vspec = pl.BlockSpec(memory_space=pltpu.MemorySpace.VMEM)
    flops = (2 * 2 * B * CHW * PH          # two conv-as-matmul branches
             + 2 * 2 * B * PH * LANE       # pool_fc lo/hi
             + 3 * 2 * B * LANE * LANE)    # head layers
    bytes_accessed = (2 * B * CHW * 4      # x, x_next (f32)
                      + SLAB_ROWS * LANE * 2   # bf16 weight slab
                      + 8 * LANE * 4           # bias block
                      + B * LANE * 4)          # output

    out = pl.pallas_call(
        fused_kernel,
        out_shape=jax.ShapeDtypeStruct((B, LANE), jnp.float32),
        in_specs=[vspec, vspec, vspec, vspec],
        out_specs=vspec,
        cost_estimate=pl.CostEstimate(flops=flops, transcendentals=0,
                                      bytes_accessed=bytes_accessed),
    )(x_flat, xn_flat, prepared["w_slab"], prepared["biases"])
    return out[:, 0]                     # matches f_out.squeeze()


# ---------------- pure-JAX f32 reference (for verification) ----------------
def im2col(x):
    """NCHW image -> (B, P, C*k*k) non-overlapping patches (conv stride == kernel)."""
    b, c, h, w = x.shape
    k = KSTRIDE
    x = x.reshape(b, c, h // k, k, w // k, k)
    x = x.transpose(0, 2, 4, 1, 3, 5)
    return x.reshape(b, (h // k) * (w // k), c * k * k)


def reference_forward(params, x, x_next):
    def enc(img):
        pt = im2col(img)
        h = jax.nn.relu(pt @ params["w_conv"] + params["b_conv"])
        pooled = h.mean(axis=1)
        return pooled @ params["w_fc"] + params["b_fc"]
    z, zn = enc(x), enc(x_next)
    zc = jnp.concatenate([z, zn], axis=1)
    w1 = jnp.concatenate([params["w1a"], params["w1b"]], axis=0)
    h = jax.nn.relu(zc @ w1 + params["b1"])
    h = jax.nn.relu(h @ params["w2"] + params["b2"])
    return jnp.squeeze(h @ params["w3"] + params["b3"])


# ---------------- deterministic parameter init ----------------
def init_params(key):
    ks = jax.random.split(key, 10)
    def u(k, shape, fan_in):
        lim = 1.0 / jnp.sqrt(jnp.float32(fan_in))
        return jax.random.uniform(k, shape, jnp.float32, -lim, lim)
    return {
        # synthetic encoder
        "w_conv": u(ks[0], (CKK, HIDDEN), CKK),
        "b_conv": u(ks[1], (1, HIDDEN), CKK),
        "w_fc":   u(ks[2], (HIDDEN, Z_DIM), HIDDEN),
        "b_fc":   u(ks[3], (1, Z_DIM), HIDDEN),
        # sptm head: Linear(2Z,64) / Linear(64,64) / Linear(64,1)
        "w1a": u(ks[4], (Z_DIM, H1), 2 * Z_DIM),
        "w1b": u(ks[5], (Z_DIM, H1), 2 * Z_DIM),
        "b1":  u(ks[6], (1, H1), 2 * Z_DIM),
        "w2":  u(ks[7], (H1, H2), H1),
        "b2":  u(ks[8], (1, H2), H1),
        "w3":  u(ks[9], (H2, 1), H2),
        "b3":  jnp.zeros((1, 1), jnp.float32),
    }


if __name__ == "__main__":
    key = jax.random.PRNGKey(0)
    kp, kx, kxn = jax.random.split(key, 3)
    params = init_params(kp)
    prepared = prepare_params(params)        # weight packing done once, outside jit

    x      = jax.random.normal(kx,  (B, C_IN, IMG, IMG), jnp.float32)   # NCHW
    x_next = jax.random.normal(kxn, (B, C_IN, IMG, IMG), jnp.float32)   # NCHW

    fwd = jax.jit(classifier_forward)
    out = jax.block_until_ready(fwd(prepared, x, x_next))

    ref = reference_forward(params, x, x_next)
    assert out.shape == (B,), out.shape
    # bf16 MXU operands (per perf review) -> compare against the f32 reference
    # with a bf16-appropriate tolerance (accumulation is f32 throughout).
    assert jnp.allclose(out, ref, rtol=2e-2, atol=2e-2), (out, ref)

    print("KERNEL_OK")
</pallas_src>

<mosaic_0001>
module attributes {stable_mosaic.version = 11 : i64} {
  func.func @fused_kernel(%arg0: memref<2x768xf32, #tpu.memory_space<vmem>>, %arg1: memref<2x768xf32, #tpu.memory_space<vmem>>, %arg2: memref<1408x128xbf16, #tpu.memory_space<vmem>>, %arg3: memref<8x128xf32, #tpu.memory_space<vmem>>, %arg4: memref<2x128xf32, #tpu.memory_space<vmem>>) attributes {dimension_semantics = [], scalar_prefetch = 0 : i64, scratch_operands = 0 : i64, tpu.core_type = #tpu.core_type<tc>} {
    %c0 = arith.constant 0 : index
    %c0_0 = arith.constant 0 : index
    %0 = vector.load %arg2[%c0, %c0_0] : memref<1408x128xbf16, #tpu.memory_space<vmem>>, vector<768x128xbf16>
    %c768 = arith.constant 768 : index
    %c0_1 = arith.constant 0 : index
    %1 = vector.load %arg2[%c768, %c0_1] : memref<1408x128xbf16, #tpu.memory_space<vmem>>, vector<128x128xbf16>
    %c896 = arith.constant 896 : index
    %c0_2 = arith.constant 0 : index
    %2 = vector.load %arg2[%c896, %c0_2] : memref<1408x128xbf16, #tpu.memory_space<vmem>>, vector<128x128xbf16>
    %c1024 = arith.constant 1024 : index
    %c0_3 = arith.constant 0 : index
    %3 = vector.load %arg2[%c1024, %c0_3] : memref<1408x128xbf16, #tpu.memory_space<vmem>>, vector<128x128xbf16>
    %c1152 = arith.constant 1152 : index
    %c0_4 = arith.constant 0 : index
    %4 = vector.load %arg2[%c1152, %c0_4] : memref<1408x128xbf16, #tpu.memory_space<vmem>>, vector<128x128xbf16>
    %c1280 = arith.constant 1280 : index
    %c0_5 = arith.constant 0 : index
    %5 = vector.load %arg2[%c1280, %c0_5] : memref<1408x128xbf16, #tpu.memory_space<vmem>>, vector<128x128xbf16>
    %c0_6 = arith.constant 0 : index
    %c0_7 = arith.constant 0 : index
    %6 = vector.load %arg3[%c0_6, %c0_7] : memref<8x128xf32, #tpu.memory_space<vmem>>, vector<1x128xf32>
    %c1 = arith.constant 1 : index
    %c0_8 = arith.constant 0 : index
    %7 = vector.load %arg3[%c1, %c0_8] : memref<8x128xf32, #tpu.memory_space<vmem>>, vector<1x128xf32>
    %c2 = arith.constant 2 : index
    %c0_9 = arith.constant 0 : index
    %8 = vector.load %arg3[%c2, %c0_9] : memref<8x128xf32, #tpu.memory_space<vmem>>, vector<1x128xf32>
    %c3 = arith.constant 3 : index
    %c0_10 = arith.constant 0 : index
    %9 = vector.load %arg3[%c3, %c0_10] : memref<8x128xf32, #tpu.memory_space<vmem>>, vector<1x128xf32>
    %c4 = arith.constant 4 : index
    %c0_11 = arith.constant 0 : index
    %10 = vector.load %arg3[%c4, %c0_11] : memref<8x128xf32, #tpu.memory_space<vmem>>, vector<1x128xf32>
    %c0_12 = arith.constant 0 : index
    %c0_13 = arith.constant 0 : index
    %11 = vector.load %arg0[%c0_12, %c0_13] : memref<2x768xf32, #tpu.memory_space<vmem>>, vector<2x768xf32>
    %12 = arith.truncf %11 : vector<2x768xf32> to vector<2x768xbf16>
    %c0_14 = arith.constant 0 : index
    %c0_15 = arith.constant 0 : index
    %13 = vector.load %arg1[%c0_14, %c0_15] : memref<2x768xf32, #tpu.memory_space<vmem>>, vector<2x768xf32>
    %14 = arith.truncf %13 : vector<2x768xf32> to vector<2x768xbf16>
    %cst = arith.constant dense<0.000000e+00> : vector<2x128xf32>
    %15 = tpu.matmul %12, %0, %cst {dimension_numbers = #tpu.dot_dimension_numbers<[1], [0], [0], [1], [0, 0, 1, 1], [], []>} : vector<2x768xbf16>, vector<768x128xbf16>, vector<2x128xf32> -> vector<2x128xf32>
    %16 = vector.broadcast %6 : vector<1x128xf32> to vector<2x128xf32>
    %17 = arith.addf %15, %16 : vector<2x128xf32>
    %cst_16 = arith.constant 0.000000e+00 : f32
    %18 = vector.broadcast %cst_16 : f32 to vector<2x128xf32>
    %19 = arith.maximumf %17, %18 : vector<2x128xf32>
    %cst_17 = arith.constant dense<0.000000e+00> : vector<2x128xf32>
    %20 = tpu.matmul %14, %0, %cst_17 {dimension_numbers = #tpu.dot_dimension_numbers<[1], [0], [0], [1], [0, 0, 1, 1], [], []>} : vector<2x768xbf16>, vector<768x128xbf16>, vector<2x128xf32> -> vector<2x128xf32>
    %21 = vector.broadcast %6 : vector<1x128xf32> to vector<2x128xf32>
    %22 = arith.addf %20, %21 : vector<2x128xf32>
    %cst_18 = arith.constant 0.000000e+00 : f32
    %23 = vector.broadcast %cst_18 : f32 to vector<2x128xf32>
    %24 = arith.maximumf %22, %23 : vector<2x128xf32>
    %25 = arith.truncf %19 : vector<2x128xf32> to vector<2x128xbf16>
    %cst_19 = arith.constant dense<0.000000e+00> : vector<2x128xf32>
    %26 = tpu.matmul %25, %1, %cst_19 {dimension_numbers = #tpu.dot_dimension_numbers<[1], [0], [0], [1], [0, 0, 1, 1], [], []>} : vector<2x128xbf16>, vector<128x128xbf16>, vector<2x128xf32> -> vector<2x128xf32>
    %27 = arith.truncf %24 : vector<2x128xf32> to vector<2x128xbf16>
    %cst_20 = arith.constant dense<0.000000e+00> : vector<2x128xf32>
    %28 = tpu.matmul %27, %2, %cst_20 {dimension_numbers = #tpu.dot_dimension_numbers<[1], [0], [0], [1], [0, 0, 1, 1], [], []>} : vector<2x128xbf16>, vector<128x128xbf16>, vector<2x128xf32> -> vector<2x128xf32>
    %29 = arith.addf %26, %28 : vector<2x128xf32>
    %30 = vector.broadcast %7 : vector<1x128xf32> to vector<2x128xf32>
    %31 = arith.addf %29, %30 : vector<2x128xf32>
    %32 = arith.truncf %31 : vector<2x128xf32> to vector<2x128xbf16>
    %cst_21 = arith.constant dense<0.000000e+00> : vector<2x128xf32>
    %33 = tpu.matmul %32, %3, %cst_21 {dimension_numbers = #tpu.dot_dimension_numbers<[1], [0], [0], [1], [0, 0, 1, 1], [], []>} : vector<2x128xbf16>, vector<128x128xbf16>, vector<2x128xf32> -> vector<2x128xf32>
    %34 = vector.broadcast %8 : vector<1x128xf32> to vector<2x128xf32>
    %35 = arith.addf %33, %34 : vector<2x128xf32>
    %cst_22 = arith.constant 0.000000e+00 : f32
    %36 = vector.broadcast %cst_22 : f32 to vector<2x128xf32>
    %37 = arith.maximumf %35, %36 : vector<2x128xf32>
    %38 = arith.truncf %37 : vector<2x128xf32> to vector<2x128xbf16>
    %cst_23 = arith.constant dense<0.000000e+00> : vector<2x128xf32>
    %39 = tpu.matmul %38, %4, %cst_23 {dimension_numbers = #tpu.dot_dimension_numbers<[1], [0], [0], [1], [0, 0, 1, 1], [], []>} : vector<2x128xbf16>, vector<128x128xbf16>, vector<2x128xf32> -> vector<2x128xf32>
    %40 = vector.broadcast %9 : vector<1x128xf32> to vector<2x128xf32>
    %41 = arith.addf %39, %40 : vector<2x128xf32>
    %cst_24 = arith.constant 0.000000e+00 : f32
    %42 = vector.broadcast %cst_24 : f32 to vector<2x128xf32>
    %43 = arith.maximumf %41, %42 : vector<2x128xf32>
    %44 = arith.truncf %43 : vector<2x128xf32> to vector<2x128xbf16>
    %cst_25 = arith.constant dense<0.000000e+00> : vector<2x128xf32>
    %45 = tpu.matmul %44, %5, %cst_25 {dimension_numbers = #tpu.dot_dimension_numbers<[1], [0], [0], [1], [0, 0, 1, 1], [], []>} : vector<2x128xbf16>, vector<128x128xbf16>, vector<2x128xf32> -> vector<2x128xf32>
    %46 = vector.broadcast %10 : vector<1x128xf32> to vector<2x128xf32>
    %47 = arith.addf %45, %46 : vector<2x128xf32>
    %c0_26 = arith.constant 0 : index
    %c0_27 = arith.constant 0 : index
    %48 = vector.load %arg4[%c0_26, %c0_27] : memref<2x128xf32, #tpu.memory_space<vmem>>, vector<2x128xf32>
    tpu.vector_store %arg4[%c0_26, %c0_27], %47 {strides = array<i32>} : memref<2x128xf32, #tpu.memory_space<vmem>>, vector<2x128xf32>,
    return
  }
}

</mosaic_0001>

<llo_original>
// kernel: classifier_forward.1
$region0: #{classifier_forward.1}
  #allocation0 [shape = 'u32[]', space=smem, size = 0x4, offset = 0x4, fixed_abs, tag = 'smem constant byte address 0x4 - core index']
  #allocation1 [shape = 'u32[144,128]{1,0:T(1,128)}', space=vmem, size = 0x12000, scoped, tag = 'internal scratch']
  %s0 = inlined_call_operand.vmem [shape: f32[2,768], index: 0, kind: input, shape index: {}]
  %s1 = inlined_call_operand.vmem [shape: f32[2,768], index: 1, kind: input, shape index: {}]
  %s2 = inlined_call_operand.hbm [shape: bf16[1408,128], index: 2, kind: input, shape index: {}]
  %s3 = inlined_call_operand.vmem [shape: f32[8,128], index: 3, kind: input, shape index: {}]
  %s4 = inlined_call_operand.vmem [shape: f32[2,128], index: 4, kind: output, shape index: {}]
  %s5 = sld [smem:[#allocation0]]
  $region30: #{classifier_forward.1} parent=0
    _
  %s7 = ssub.s32 1, %s5
  %s8 = scalar_select 0, %s7, %s5
  $region1: #{classifier_forward.1} parent=0
    #allocation2 [shape = 'u8[360448]{0}', space=vmem, size = 0x58000, scoped, tag = 'input window, operand 2, single buffered']
    #allocation3 [shape = 's32[1]{0}', space=sflag, size = 0x4, scoped, tag = 'scoped memory for classifier_forward.1']
    %9 = vsyncpa [#allocation3], 0
    // Predicated region
    $region2: #{classifier_forward.1} parent=1 // pred_check
      _
    $region3: #{classifier_forward.1} parent=1 // pred_check_branch
      %11 = sbr.rel (0) target = $region5
    $region4: #{classifier_forward.1} parent=1 // pred_region
      _
    $region5: #{classifier_forward.1} parent=1 // pred_fallthru
      _
    // Predicated region
    $region6: #{classifier_forward.1} parent=1 // pred_check
      _
    $region7: #{classifier_forward.1} parent=1 // pred_check_branch
      %13 = sbr.rel (0) target = $region9
    $region8: #{classifier_forward.1} parent=1 // pred_region
      _
    $region9: #{classifier_forward.1} parent=1 // pred_fallthru
      _
    // Predicated region
    $region10: #{classifier_forward.1} parent=1 // pred_check
      _
    $region11: #{classifier_forward.1} parent=1 // pred_check_branch
      %15 = sbr.rel (0) target = $region13
    $region12: #{classifier_forward.1} parent=1 // pred_region
      %s17 = ssub.s32 11264, 11264
      %18 = vsyncadd [#allocation3], %s17
      %s19 = sshll.u32 [#allocation2], 4
      %s20 = int_to_ptr.vmem [resolvable:$true] %s19
      %25 = dma.hbm_to_vmem [thread:$0]  %s2, 11264, %s20, [#allocation3], 64, 64, 4
    $region13: #{classifier_forward.1} parent=1 // pred_fallthru
      _
    // Predicated region
    $region14: #{classifier_forward.1} parent=1 // pred_check
      _
    $region15: #{classifier_forward.1} parent=1 // pred_check_branch
      %27 = sbr.rel (0) target = $region17
    $region16: #{classifier_forward.1} parent=1 // pred_region
      _
    $region17: #{classifier_forward.1} parent=1 // pred_fallthru
      _
    // Predicated region
    $region18: #{classifier_forward.1} parent=1 // pred_check
      _
    $region19: #{classifier_forward.1} parent=1 // pred_check_branch
      %29 = sbr.rel (0) target = $region21
    $region20: #{classifier_forward.1} parent=1 // pred_region
      %30 = dma.done [#allocation3], 11264
    $region21: #{classifier_forward.1} parent=1 // pred_fallthru
      _
    %v32 = vld [vmem:[#allocation2] sm:$0xf]
    %v33 = vld [vmem:[#allocation2 + $0x4] sm:$0xf]
    %v34 = vld [vmem:[#allocation2 + $0x8] sm:$0xf]
    %v35 = vld [vmem:[#allocation2 + $0xc] sm:$0xf]
    %v36 = vld [vmem:[#allocation2 + $0x10] sm:$0xf]
    %v37 = vld [vmem:[#allocation2 + $0x14] sm:$0xf]
    %v38 = vld [vmem:[#allocation2 + $0x18] sm:$0xf]
    %v39 = vld [vmem:[#allocation2 + $0x1c] sm:$0xf]
    %v40 = vld [vmem:[#allocation2 + $0x20] sm:$0xf]
    %v41 = vld [vmem:[#allocation2 + $0x24] sm:$0xf]
    %v42 = vld [vmem:[#allocation2 + $0x28] sm:$0xf]
    %v43 = vld [vmem:[#allocation2 + $0x2c] sm:$0xf]
    %v44 = vld [vmem:[#allocation2 + $0x30] sm:$0xf]
    %v45 = vld [vmem:[#allocation2 + $0x34] sm:$0xf]
    %v46 = vld [vmem:[#allocation2 + $0x38] sm:$0xf]
    %v47 = vld [vmem:[#allocation2 + $0x3c] sm:$0xf]
    %v48 = vld [vmem:[#allocation2 + $0x40] sm:$0xf]
    %v49 = vld [vmem:[#allocation2 + $0x44] sm:$0xf]
    %v50 = vld [vmem:[#allocation2 + $0x48] sm:$0xf]
    %v51 = vld [vmem:[#allocation2 + $0x4c] sm:$0xf]
    %v52 = vld [vmem:[#allocation2 + $0x50] sm:$0xf]
    %v53 = vld [vmem:[#allocation2 + $0x54] sm:$0xf]
    %v54 = vld [vmem:[#allocation2 + $0x58] sm:$0xf]
    %v55 = vld [vmem:[#allocation2 + $0x5c] sm:$0xf]
    %v56 = vld [vmem:[#allocation2 + $0x60] sm:$0xf]
    %v57 = vld [vmem:[#allocation2 + $0x64] sm:$0xf]
    %v58 = vld [vmem:[#allocation2 + $0x68] sm:$0xf]
    %v59 = vld [vmem:[#allocation2 + $0x6c] sm:$0xf]
    %v60 = vld [vmem:[#allocation2 + $0x70] sm:$0xf]
    %v61 = vld [vmem:[#allocation2 + $0x74] sm:$0xf]
    %v62 = vld [vmem:[#allocation2 + $0x78] sm:$0xf]
    %v63 = vld [vmem:[#allocation2 + $0x7c] sm:$0xf]
    %v64 = vld [vmem:[#allocation2 + $0x80] sm:$0xf]
    %v65 = vld [vmem:[#allocation2 + $0x84] sm:$0xf]
    %v66 = vld [vmem:[#allocation2 + $0x88] sm:$0xf]
    %v67 = vld [vmem:[#allocation2 + $0x8c] sm:$0xf]
    %v68 = vld [vmem:[#allocation2 + $0x90] sm:$0xf]
    %v69 = vld [vmem:[#allocation2 + $0x94] sm:$0xf]
    %v70 = vld [vmem:[#allocation2 + $0x98] sm:$0xf]
    %v71 = vld [vmem:[#allocation2 + $0x9c] sm:$0xf]
    %v72 = vld [vmem:[#allocation2 + $0xa0] sm:$0xf]
    %v73 = vld [vmem:[#allocation2 + $0xa4] sm:$0xf]
    %v74 = vld [vmem:[#allocation2 + $0xa8] sm:$0xf]
    %v75 = vld [vmem:[#allocation2 + $0xac] sm:$0xf]
    %v76 = vld [vmem:[#allocation2 + $0xb0] sm:$0xf]
    %v77 = vld [vmem:[#allocation2 + $0xb4] sm:$0xf]
    %v78 = vld [vmem:[#allocation2 + $0xb8] sm:$0xf]
    %v79 = vld [vmem:[#allocation2 + $0xbc] sm:$0xf]
    %v80 = vld [vmem:[#allocation2 + $0xc0] sm:$0xf]
    %v81 = vld [vmem:[#allocation2 + $0xc4] sm:$0xf]
    %v82 = vld [vmem:[#allocation2 + $0xc8] sm:$0xf]
    %v83 = vld [vmem:[#allocation2 + $0xcc] sm:$0xf]
    %v84 = vld [vmem:[#allocation2 + $0xd0] sm:$0xf]
    %v85 = vld [vmem:[#allocation2 + $0xd4] sm:$0xf]
    %v86 = vld [vmem:[#allocation2 + $0xd8] sm:$0xf]
    %v87 = vld [vmem:[#allocation2 + $0xdc] sm:$0xf]
    %v88 = vld [vmem:[#allocation2 + $0xe0] sm:$0xf]
    %v89 = vld [vmem:[#allocation2 + $0xe4] sm:$0xf]
    %v90 = vld [vmem:[#allocation2 + $0xe8] sm:$0xf]
    %v91 = vld [vmem:[#allocation2 + $0xec] sm:$0xf]
    %v92 = vld [vmem:[#allocation2 + $0xf0] sm:$0xf]
    %v93 = vld [vmem:[#allocation2 + $0xf4] sm:$0xf]
    %v94 = vld [vmem:[#allocation2 + $0xf8] sm:$0xf]
    %v95 = vld [vmem:[#allocation2 + $0xfc] sm:$0xf]
    %v96 = vld [vmem:[#allocation2 + $0x100] sm:$0xf]
    %v97 = vld [vmem:[#allocation2 + $0x104] sm:$0xf]
    %v98 = vld [vmem:[#allocation2 + $0x108] sm:$0xf]
    %v99 = vld [vmem:[#allocation2 + $0x10c] sm:$0xf]
    %v100 = vld [vmem:[#allocation2 + $0x110] sm:$0xf]
    %v101 = vld [vmem:[#allocation2 + $0x114] sm:$0xf]
    %v102 = vld [vmem:[#allocation2 + $0x118] sm:$0xf]
    %v103 = vld [vmem:[#allocation2 + $0x11c] sm:$0xf]
    %v104 = vld [vmem:[#allocation2 + $0x120] sm:$0xf]
    %v105 = vld [vmem:[#allocation2 + $0x124] sm:$0xf]
    %v106 = vld [vmem:[#allocation2 + $0x128] sm:$0xf]
    %v107 = vld [vmem:[#allocation2 + $0x12c] sm:$0xf]
    %v108 = vld [vmem:[#allocation2 + $0x130] sm:$0xf]
    %v109 = vld [vmem:[#allocation2 + $0x134] sm:$0xf]
    %v110 = vld [vmem:[#allocation2 + $0x138] sm:$0xf]
    %v111 = vld [vmem:[#allocation2 + $0x13c] sm:$0xf]
    %v112 = vld [vmem:[#allocation2 + $0x140] sm:$0xf]
    %v113 = vld [vmem:[#allocation2 + $0x144] sm:$0xf]
    %v114 = vld [vmem:[#allocation2 + $0x148] sm:$0xf]
    %v115 = vld [vmem:[#allocation2 + $0x14c] sm:$0xf]
    %v116 = vld [vmem:[#allocation2 + $0x150] sm:$0xf]
    %v117 = vld [vmem:[#allocation2 + $0x154] sm:$0xf]
    %v118 = vld [vmem:[#allocation2 + $0x158] sm:$0xf]
    %v119 = vld [vmem:[#allocation2 + $0x15c] sm:$0xf]
    %v120 = vld [vmem:[#allocation2 + $0x160] sm:$0xf]
    %v121 = vld [vmem:[#allocation2 + $0x164] sm:$0xf]
    %v122 = vld [vmem:[#allocation2 + $0x168] sm:$0xf]
    %v123 = vld [vmem:[#allocation2 + $0x16c] sm:$0xf]
    %v124 = vld [vmem:[#allocation2 + $0x170] sm:$0xf]
    %v125 = vld [vmem:[#allocation2 + $0x174] sm:$0xf]
    %v126 = vld [vmem:[#allocation2 + $0x178] sm:$0xf]
    %v127 = vld [vmem:[#allocation2 + $0x17c] sm:$0xf]
    %v128 = vld [vmem:[#allocation2 + $0x180] sm:$0xf]
    %v129 = vld [vmem:[#allocation2 + $0x184] sm:$0xf]
    %v130 = vld [vmem:[#allocation2 + $0x188] sm:$0xf]
    %v131 = vld [vmem:[#allocation2 + $0x18c] sm:$0xf]
    %v132 = vld [vmem:[#allocation2 + $0x190] sm:$0xf]
    %v133 = vld [vmem:[#allocation2 + $0x194] sm:$0xf]
    %v134 = vld [vmem:[#allocation2 + $0x198] sm:$0xf]
    %v135 = vld [vmem:[#allocation2 + $0x19c] sm:$0xf]
    %v136 = vld [vmem:[#allocation2 + $0x1a0] sm:$0xf]
    %v137 = vld [vmem:[#allocation2 + $0x1a4] sm:$0xf]
    %v138 = vld [vmem:[#allocation2 + $0x1a8] sm:$0xf]
    %v139 = vld [vmem:[#allocation2 + $0x1ac] sm:$0xf]
    %v140 = vld [vmem:[#allocation2 + $0x1b0] sm:$0xf]
    %v141 = vld [vmem:[#allocation2 + $0x1b4] sm:$0xf]
    %v142 = vld [vmem:[#allocation2 + $0x1b8] sm:$0xf]
    %v143 = vld [vmem:[#allocation2 + $0x1bc] sm:$0xf]
    %v144 = vld [vmem:[#allocation2 + $0x1c0] sm:$0xf]
    %v145 = vld [vmem:[#allocation2 + $0x1c4] sm:$0xf]
    %v146 = vld [vmem:[#allocation2 + $0x1c8] sm:$0xf]
    %v147 = vld [vmem:[#allocation2 + $0x1cc] sm:$0xf]
    %v148 = vld [vmem:[#allocation2 + $0x1d0] sm:$0xf]
    %v149 = vld [vmem:[#allocation2 + $0x1d4] sm:$0xf]
    %v150 = vld [vmem:[#allocation2 + $0x1d8] sm:$0xf]
    %v151 = vld [vmem:[#allocation2 + $0x1dc] sm:$0xf]
    %v152 = vld [vmem:[#allocation2 + $0x1e0] sm:$0xf]
    %v153 = vld [vmem:[#allocation2 + $0x1e4] sm:$0xf]
    %v154 = vld [vmem:[#allocation2 + $0x1e8] sm:$0xf]
    %v155 = vld [vmem:[#allocation2 + $0x1ec] sm:$0xf]
    %v156 = vld [vmem:[#allocation2 + $0x1f0] sm:$0xf]
    %v157 = vld [vmem:[#allocation2 + $0x1f4] sm:$0xf]
    %v158 = vld [vmem:[#allocation2 + $0x1f8] sm:$0xf]
    %v159 = vld [vmem:[#allocation2 + $0x1fc] sm:$0xf]
    %v160 = vld [vmem:[#allocation2 + $0x200] sm:$0xf]
    %v161 = vld [vmem:[#allocation2 + $0x204] sm:$0xf]
    %v162 = vld [vmem:[#allocation2 + $0x208] sm:$0xf]
    %v163 = vld [vmem:[#allocation2 + $0x20c] sm:$0xf]
    %v164 = vld [vmem:[#allocation2 + $0x210] sm:$0xf]
    %v165 = vld [vmem:[#allocation2 + $0x214] sm:$0xf]
    %v166 = vld [vmem:[#allocation2 + $0x218] sm:$0xf]
    %v167 = vld [vmem:[#allocation2 + $0x21c] sm:$0xf]
    %v168 = vld [vmem:[#allocation2 + $0x220] sm:$0xf]
    %v169 = vld [vmem:[#allocation2 + $0x224] sm:$0xf]
    %v170 = vld [vmem:[#allocation2 + $0x228] sm:$0xf]
    %v171 = vld [vmem:[#allocation2 + $0x22c] sm:$0xf]
    %v172 = vld [vmem:[#allocation2 + $0x230] sm:$0xf]
    %v173 = vld [vmem:[#allocation2 + $0x234] sm:$0xf]
    %v174 = vld [vmem:[#allocation2 + $0x238] sm:$0xf]
    %v175 = vld [vmem:[#allocation2 + $0x23c] sm:$0xf]
    %v176 = vld [vmem:[#allocation2 + $0x240] sm:$0xf]
    %v177 = vld [vmem:[#allocation2 + $0x244] sm:$0xf]
    %v178 = vld [vmem:[#allocation2 + $0x248] sm:$0xf]
    %v179 = vld [vmem:[#allocation2 + $0x24c] sm:$0xf]
    %v180 = vld [vmem:[#allocation2 + $0x250] sm:$0xf]
    %v181 = vld [vmem:[#allocation2 + $0x254] sm:$0xf]
    %v182 = vld [vmem:[#allocation2 + $0x258] sm:$0xf]
    %v183 = vld [vmem:[#allocation2 + $0x25c] sm:$0xf]
    %v184 = vld [vmem:[#allocation2 + $0x260] sm:$0xf]
    %v185 = vld [vmem:[#allocation2 + $0x264] sm:$0xf]
    %v186 = vld [vmem:[#allocation2 + $0x268] sm:$0xf]
    %v187 = vld [vmem:[#allocation2 + $0x26c] sm:$0xf]
    %v188 = vld [vmem:[#allocation2 + $0x270] sm:$0xf]
    %v189 = vld [vmem:[#allocation2 + $0x274] sm:$0xf]
    %v190 = vld [vmem:[#allocation2 + $0x278] sm:$0xf]
    %v191 = vld [vmem:[#allocation2 + $0x27c] sm:$0xf]
    %v192 = vld [vmem:[#allocation2 + $0x280] sm:$0xf]
    %v193 = vld [vmem:[#allocation2 + $0x284] sm:$0xf]
    %v194 = vld [vmem:[#allocation2 + $0x288] sm:$0xf]
    %v195 = vld [vmem:[#allocation2 + $0x28c] sm:$0xf]
    %v196 = vld [vmem:[#allocation2 + $0x290] sm:$0xf]
    %v197 = vld [vmem:[#allocation2 + $0x294] sm:$0xf]
    %v198 = vld [vmem:[#allocation2 + $0x298] sm:$0xf]
    %v199 = vld [vmem:[#allocation2 + $0x29c] sm:$0xf]
    %v200 = vld [vmem:[#allocation2 + $0x2a0] sm:$0xf]
    %v201 = vld [vmem:[#allocation2 + $0x2a4] sm:$0xf]
    %v202 = vld [vmem:[#allocation2 + $0x2a8] sm:$0xf]
    %v203 = vld [vmem:[#allocation2 + $0x2ac] sm:$0xf]
    %v204 = vld [vmem:[#allocation2 + $0x2b0] sm:$0xf]
    %v205 = vld [vmem:[#allocation2 + $0x2b4] sm:$0xf]
    %v206 = vld [vmem:[#allocation2 + $0x2b8] sm:$0xf]
    %v207 = vld [vmem:[#allocation2 + $0x2bc] sm:$0xf]
    %v208 = vld [vmem:[%s3] sm:$0x1]
    %v209 = vld [vmem:[%s3 + $0x1] sm:$0x1]
    %v210 = vld [vmem:[%s3 + $0x2] sm:$0x1]
    %v211 = vld [vmem:[%s3 + $0x3] sm:$0x1]
    %v212 = vld [vmem:[%s3 + $0x4] sm:$0x1]
    %v213 = vld [vmem:[%s0] sm:$0xff]
    %v214 = vld [vmem:[%s0 + $0x8] sm:$0xf]
    %v217 = vcombine.high %v213, %v213
    %v219 = vunpack.c.l.s4 1983009808
    %v220 = vunpack.c.0.s8 %v219
    %v221 = vlaneseq
    %v222 = vshrl.u32 %v221, 7
    %v223 = vsub.s32 %v220, %v222
    %v224 = vrot.slane %v213, %v223
    %v226 = vunpack.c.l.s4 1983009808
    %v227 = vunpack.c.0.s8 %v226
    %v228 = vlaneseq
    %v229 = vshrl.u32 %v228, 7
    %v230 = vsub.s32 %v227, %v229
    %v231 = vrot.slane %v217, %v230
    %v232 = vcombine.high %v224, %v224
    %v233 = vcombine.high %v231, %v231
    %v235 = vunpack.c.l.s4 1983009808
    %v236 = vunpack.c.0.s8 %v235
    %v237 = vlaneseq
    %v238 = vshrl.u32 %v237, 7
    %v239 = vsub.s32 %v236, %v238
    %v240 = vrot.slane %v214, %v239
    %v241 = vcombine.high %v240, %v240
    %v248 = vpack.c.bf16 %v224, %v224
    %v249 = vpack.c.bf16 %v232, %v232
    %v250 = vpack.c.bf16 %v231, %v231
    %v251 = vpack.c.bf16 %v233, %v233
    %v252 = vpack.c.bf16 %v240, %v240
    %v253 = vpack.c.bf16 %v241, %v241
    %v254 = vld [vmem:[%s1] sm:$0xff]
    %v255 = vld [vmem:[%s1 + $0x8] sm:$0xf]
    %v258 = vcombine.high %v254, %v254
    %v260 = vunpack.c.l.s4 1983009808
    %v261 = vunpack.c.0.s8 %v260
    %v262 = vlaneseq
    %v263 = vshrl.u32 %v262, 7
    %v264 = vsub.s32 %v261, %v263
    %v265 = vrot.slane %v254, %v264
    %v267 = vunpack.c.l.s4 1983009808
    %v268 = vunpack.c.0.s8 %v267
    %v269 = vlaneseq
    %v270 = vshrl.u32 %v269, 7
    %v271 = vsub.s32 %v268, %v270
    %v272 = vrot.slane %v258, %v271
    %v273 = vcombine.high %v265, %v265
    %v274 = vcombine.high %v272, %v272
    %v276 = vunpack.c.l.s4 1983009808
    %v277 = vunpack.c.0.s8 %v276
    %v278 = vlaneseq
    %v279 = vshrl.u32 %v278, 7
    %v280 = vsub.s32 %v277, %v279
    %v281 = vrot.slane %v255, %v280
    %v282 = vcombine.high %v281, %v281
    %v289 = vpack.c.bf16 %v265, %v265
    %v290 = vpack.c.bf16 %v273, %v273
    %v291 = vpack.c.bf16 %v272, %v272
    %v292 = vpack.c.bf16 %v274, %v274
    %v293 = vpack.c.bf16 %v281, %v281
    %v294 = vpack.c.bf16 %v282, %v282
    %v295 = vlaneseq
    %v296 = vshrl.u32 %v295, 7
    %v297 = vsub.s32 0, %v296
    %v298 = vrot.slane %v208, %v297
    %v395 = vunpack.c.l.b16 %v32
    %v396 = vunpack.c.l.b16 %v33
    %v397 = vunpack.c.l.b16 %v34
    %v398 = vunpack.c.l.b16 %v35
    %v399 = vunpack.c.l.b16 %v36
    %v400 = vunpack.c.l.b16 %v37
    %v401 = vunpack.c.l.b16 %v38
    %v402 = vunpack.c.l.b16 %v39
    %v403 = vunpack.c.l.b16 %v40
    %v404 = vunpack.c.l.b16 %v41
    %v405 = vunpack.c.l.b16 %v42
    %v406 = vunpack.c.l.b16 %v43
    %v407 = vunpack.c.l.b16 %v44
    %v408 = vunpack.c.l.b16 %v45
    %v409 = vunpack.c.l.b16 %v46
    %v410 = vunpack.c.l.b16 %v47
    %v411 = vunpack.c.l.b16 %v48
    %v412 = vunpack.c.l.b16 %v49
    %v413 = vunpack.c.l.b16 %v50
    %v414 = vunpack.c.l.b16 %v51
    %v415 = vunpack.c.l.b16 %v52
    %v416 = vunpack.c.l.b16 %v53
    %v417 = vunpack.c.l.b16 %v54
    %v418 = vunpack.c.l.b16 %v55
    %v419 = vunpack.c.l.b16 %v56
    %v420 = vunpack.c.l.b16 %v57
    %v421 = vunpack.c.l.b16 %v58
    %v422 = vunpack.c.l.b16 %v59
    %v423 = vunpack.c.l.b16 %v60
    %v424 = vunpack.c.l.b16 %v61
    %v425 = vunpack.c.l.b16 %v62
    %v426 = vunpack.c.l.b16 %v63
    %v427 = vunpack.c.l.b16 %v64
    %v428 = vunpack.c.l.b16 %v65
    %v429 = vunpack.c.l.b16 %v66
    %v430 = vunpack.c.l.b16 %v67
    %v431 = vunpack.c.l.b16 %v68
    %v432 = vunpack.c.l.b16 %v69
    %v433 = vunpack.c.l.b16 %v70
    %v434 = vunpack.c.l.b16 %v71
    %v435 = vunpack.c.l.b16 %v72
    %v436 = vunpack.c.l.b16 %v73
    %v437 = vunpack.c.l.b16 %v74
    %v438 = vunpack.c.l.b16 %v75
    %v439 = vunpack.c.l.b16 %v76
    %v440 = vunpack.c.l.b16 %v77
    %v441 = vunpack.c.l.b16 %v78
    %v442 = vunpack.c.l.b16 %v79
    %v443 = vunpack.c.l.b16 %v80
    %v444 = vunpack.c.l.b16 %v81
    %v445 = vunpack.c.l.b16 %v82
    %v446 = vunpack.c.l.b16 %v83
    %v447 = vunpack.c.l.b16 %v84
    %v448 = vunpack.c.l.b16 %v85
    %v449 = vunpack.c.l.b16 %v86
    %v450 = vunpack.c.l.b16 %v87
    %v451 = vunpack.c.l.b16 %v88
    %v452 = vunpack.c.l.b16 %v89
    %v453 = vunpack.c.l.b16 %v90
    %v454 = vunpack.c.l.b16 %v91
    %v455 = vunpack.c.l.b16 %v92
    %v456 = vunpack.c.l.b16 %v93
    %v457 = vunpack.c.l.b16 %v94
    %v458 = vunpack.c.l.b16 %v95
    %v459 = vunpack.c.l.b16 %v96
    %v460 = vunpack.c.l.b16 %v97
    %v461 = vunpack.c.l.b16 %v98
    %v462 = vunpack.c.l.b16 %v99
    %v463 = vunpack.c.l.b16 %v100
    %v464 = vunpack.c.l.b16 %v101
    %v465 = vunpack.c.l.b16 %v102
    %v466 = vunpack.c.l.b16 %v103
    %v467 = vunpack.c.l.b16 %v104
    %v468 = vunpack.c.l.b16 %v105
    %v469 = vunpack.c.l.b16 %v106
    %v470 = vunpack.c.l.b16 %v107
    %v471 = vunpack.c.l.b16 %v108
    %v472 = vunpack.c.l.b16 %v109
    %v473 = vunpack.c.l.b16 %v110
    %v474 = vunpack.c.l.b16 %v111
    %v475 = vunpack.c.l.b16 %v112
    %v476 = vunpack.c.l.b16 %v113
    %v477 = vunpack.c.l.b16 %v114
    %v478 = vunpack.c.l.b16 %v115
    %v479 = vunpack.c.l.b16 %v116
    %v480 = vunpack.c.l.b16 %v117
    %v481 = vunpack.c.l.b16 %v118
    %v482 = vunpack.c.l.b16 %v119
    %v483 = vunpack.c.l.b16 %v120
    %v484 = vunpack.c.l.b16 %v121
    %v485 = vunpack.c.l.b16 %v122
    %v486 = vunpack.c.l.b16 %v123
    %v487 = vunpack.c.l.b16 %v124
    %v488 = vunpack.c.l.b16 %v125
    %v489 = vunpack.c.l.b16 %v126
    %v490 = vunpack.c.l.b16 %v127
    %v491 = vpack.c.b16 %v396, %v395
    %v492 = vpack.c.b16 %v398, %v397
    %v493 = vpack.c.b16 %v400, %v399
    %v494 = vpack.c.b16 %v402, %v401
    %v495 = vpack.c.b16 %v404, %v403
    %v496 = vpack.c.b16 %v406, %v405
    %v497 = vpack.c.b16 %v408, %v407
    %v498 = vpack.c.b16 %v410, %v409
    %v499 = vpack.c.b16 %v412, %v411
    %v500 = vpack.c.b16 %v414, %v413
    %v501 = vpack.c.b16 %v416, %v415
    %v502 = vpack.c.b16 %v418, %v417
    %v503 = vpack.c.b16 %v420, %v419
    %v504 = vpack.c.b16 %v422, %v421
    %v505 = vpack.c.b16 %v424, %v423
    %v506 = vpack.c.b16 %v426, %v425
    %v507 = vpack.c.b16 %v428, %v427
    %v508 = vpack.c.b16 %v430, %v429
    %v509 = vpack.c.b16 %v432, %v431
    %v510 = vpack.c.b16 %v434, %v433
    %v511 = vpack.c.b16 %v436, %v435
    %v512 = vpack.c.b16 %v438, %v437
    %v513 = vpack.c.b16 %v440, %v439
    %v514 = vpack.c.b16 %v442, %v441
    %v515 = vpack.c.b16 %v444, %v443
    %v516 = vpack.c.b16 %v446, %v445
    %v517 = vpack.c.b16 %v448, %v447
    %v518 = vpack.c.b16 %v450, %v449
    %v519 = vpack.c.b16 %v452, %v451
    %v520 = vpack.c.b16 %v454, %v453
    %v521 = vpack.c.b16 %v456, %v455
    %v522 = vpack.c.b16 %v458, %v457
    %v523 = vpack.c.b16 %v460, %v459
    %v524 = vpack.c.b16 %v462, %v461
    %v525 = vpack.c.b16 %v464, %v463
    %v526 = vpack.c.b16 %v466, %v465
    %v527 = vpack.c.b16 %v468, %v467
    %v528 = vpack.c.b16 %v470, %v469
    %v529 = vpack.c.b16 %v472, %v471
    %v530 = vpack.c.b16 %v474, %v473
    %v531 = vpack.c.b16 %v476, %v475
    %v532 = vpack.c.b16 %v478, %v477
    %v533 = vpack.c.b16 %v480, %v479
    %v534 = vpack.c.b16 %v482, %v481
    %v535 = vpack.c.b16 %v484, %v483
    %v536 = vpack.c.b16 %v486, %v485
    %v537 = vpack.c.b16 %v488, %v487
    %v538 = vpack.c.b16 %v490, %v489
    %587 = vmatprep.subr.bf16.mxu0 0
    %588 = vmatpush1.bf16.msra.mxu0 %v498
    %589 = vmatprep.subr.bf16.mxu0 0
    %590 = vmatpush1.bf16.msra.mxu0 %v497
    %591 = vmatprep.subr.bf16.mxu0 0
    %592 = vmatpush1.bf16.msra.mxu0 %v496
    %593 = vmatprep.subr.bf16.mxu0 0
    %594 = vmatpush1.bf16.msra.mxu0 %v495
    %595 = vmatprep.subr.bf16.mxu0 0
    %596 = vmatpush1.bf16.msra.mxu0 %v494
    %597 = vmatprep.subr.bf16.mxu0 0
    %598 = vmatpush1.bf16.msra.mxu0 %v493
    %599 = vmatprep.subr.bf16.mxu0 0
    %600 = vmatpush1.bf16.msra.mxu0 %v492
    %601 = vmatprep.subr.bf16.mxu0 0
    %602 = vmatpush1.bf16.msra.mxu0 %v491
    %603 = vmatprep.subr.bf16.mxu0 0
    %604 = vmatpush2.bf16.msra.mxu0 %v506
    %605 = vmatprep.subr.bf16.mxu0 0
    %606 = vmatpush2.bf16.msra.mxu0 %v505
    %607 = vmatprep.subr.bf16.mxu0 0
    %608 = vmatpush2.bf16.msra.mxu0 %v504
    %609 = vmatprep.subr.bf16.mxu0 0
    %610 = vmatpush2.bf16.msra.mxu0 %v503
    %611 = vmatprep.subr.bf16.mxu0 0
    %612 = vmatpush2.bf16.msra.mxu0 %v502
    %613 = vmatprep.subr.bf16.mxu0 0
    %614 = vmatpush2.bf16.msra.mxu0 %v501
    %615 = vmatprep.subr.bf16.mxu0 0
    %616 = vmatpush2.bf16.msra.mxu0 %v500
    %617 = vmatprep.subr.bf16.mxu0 0
    %618 = vmatpush2.bf16.msra.mxu0 %v499
    %619 = vmatprep.mubr.bf16.mxu0 %v249
    %620 = vmatmul.mubr.bf16.gmra.mxu0 %v248
    %v621 = vpop.f32.mrf.mxu0
    %v622 = vadd.f32 %v298, %v621
    %v623 = vpop.f32.mrf.mxu0
    %v624 = vpop.f32.mrf.mxu0
    %v625 = vpop.f32.mrf.mxu0
    %626 = vdwg.mxu0
    %627 = vmatprep.subr.bf16.mxu0 0
    %628 = vmatpush1.bf16.msra.mxu0 %v514
    %629 = vmatprep.subr.bf16.mxu0 0
    %630 = vmatpush1.bf16.msra.mxu0 %v513
    %631 = vmatprep.subr.bf16.mxu0 0
    %632 = vmatpush1.bf16.msra.mxu0 %v512
    %633 = vmatprep.subr.bf16.mxu0 0
    %634 = vmatpush1.bf16.msra.mxu0 %v511
    %635 = vmatprep.subr.bf16.mxu0 0
    %636 = vmatpush1.bf16.msra.mxu0 %v510
    %637 = vmatprep.subr.bf16.mxu0 0
    %638 = vmatpush1.bf16.msra.mxu0 %v509
    %639 = vmatprep.subr.bf16.mxu0 0
    %640 = vmatpush1.bf16.msra.mxu0 %v508
    %641 = vmatprep.subr.bf16.mxu0 0
    %642 = vmatpush1.bf16.msra.mxu0 %v507
    %643 = vmatprep.subr.bf16.mxu0 0
    %644 = vmatpush2.bf16.msra.mxu0 %v522
    %645 = vmatprep.subr.bf16.mxu0 0
    %646 = vmatpush2.bf16.msra.mxu0 %v521
    %647 = vmatprep.subr.bf16.mxu0 0
    %648 = vmatpush2.bf16.msra.mxu0 %v520
    %649 = vmatprep.subr.bf16.mxu0 0
    %650 = vmatpush2.bf16.msra.mxu0 %v519
    %651 = vmatprep.subr.bf16.mxu0 0
    %652 = vmatpush2.bf16.msra.mxu0 %v518
    %653 = vmatprep.subr.bf16.mxu0 0
    %654 = vmatpush2.bf16.msra.mxu0 %v517
    %655 = vmatprep.subr.bf16.mxu0 0
    %656 = vmatpush2.bf16.msra.mxu0 %v516
    %657 = vmatprep.subr.bf16.mxu0 0
    %658 = vmatpush2.bf16.msra.mxu0 %v515
    %659 = vmatprep.mubr.bf16.mxu0 %v251
    %660 = vmatmul.mubr.bf16.gmra.mxu0 %v250
    %v661 = vpop.f32.mrf.mxu0
    %v662 = vadd.f32 %v622, %v661
    %v663 = vpop.f32.mrf.mxu0
    %v664 = vpop.f32.mrf.mxu0
    %v665 = vpop.f32.mrf.mxu0
    %666 = vdwg.mxu0
    %667 = vmatprep.subr.bf16.mxu0 0
    %668 = vmatpush1.bf16.msra.mxu0 %v530
    %669 = vmatprep.subr.bf16.mxu0 0
    %670 = vmatpush1.bf16.msra.mxu0 %v529
    %671 = vmatprep.subr.bf16.mxu0 0
    %672 = vmatpush1.bf16.msra.mxu0 %v528
    %673 = vmatprep.subr.bf16.mxu0 0
    %674 = vmatpush1.bf16.msra.mxu0 %v527
    %675 = vmatprep.subr.bf16.mxu0 0
    %676 = vmatpush1.bf16.msra.mxu0 %v526
    %677 = vmatprep.subr.bf16.mxu0 0
    %678 = vmatpush1.bf16.msra.mxu0 %v525
    %679 = vmatprep.subr.bf16.mxu0 0
    %680 = vmatpush1.bf16.msra.mxu0 %v524
    %681 = vmatprep.subr.bf16.mxu0 0
    %682 = vmatpush1.bf16.msra.mxu0 %v523
    %683 = vmatprep.subr.bf16.mxu0 0
    %684 = vmatpush2.bf16.msra.mxu0 %v538
    %685 = vmatprep.subr.bf16.mxu0 0
    %686 = vmatpush2.bf16.msra.mxu0 %v537
    %687 = vmatprep.subr.bf16.mxu0 0
    %688 = vmatpush2.bf16.msra.mxu0 %v536
    %689 = vmatprep.subr.bf16.mxu0 0
    %690 = vmatpush2.bf16.msra.mxu0 %v535
    %691 = vmatprep.subr.bf16.mxu0 0
    %692 = vmatpush2.bf16.msra.mxu0 %v534
    %693 = vmatprep.subr.bf16.mxu0 0
    %694 = vmatpush2.bf16.msra.mxu0 %v533
    %695 = vmatprep.subr.bf16.mxu0 0
    %696 = vmatpush2.bf16.msra.mxu0 %v532
    %697 = vmatprep.subr.bf16.mxu0 0
    %698 = vmatpush2.bf16.msra.mxu0 %v531
    %699 = vmatprep.mubr.bf16.mxu0 %v253
    %700 = vmatmul.mubr.bf16.gmra.mxu0 %v252
    %v701 = vpop.f32.mrf.mxu0
    %v702 = vadd.f32 %v662, %v701
    %v703 = vpop.f32.mrf.mxu0
    %v704 = vpop.f32.mrf.mxu0
    %v705 = vpop.f32.mrf.mxu0
    %706 = vdwg.mxu0
    %v707 = vmax.f32 %v702, 0.0
    %708 = vmatprep.subr.bf16.mxu0 0
    %709 = vmatpush1.bf16.msra.mxu0 %v498
    %710 = vmatprep.subr.bf16.mxu0 0
    %711 = vmatpush1.bf16.msra.mxu0 %v497
    %712 = vmatprep.subr.bf16.mxu0 0
    %713 = vmatpush1.bf16.msra.mxu0 %v496
    %714 = vmatprep.subr.bf16.mxu0 0
    %715 = vmatpush1.bf16.msra.mxu0 %v495
    %716 = vmatprep.subr.bf16.mxu0 0
    %717 = vmatpush1.bf16.msra.mxu0 %v494
    %718 = vmatprep.subr.bf16.mxu0 0
    %719 = vmatpush1.bf16.msra.mxu0 %v493
    %720 = vmatprep.subr.bf16.mxu0 0
    %721 = vmatpush1.bf16.msra.mxu0 %v492
    %722 = vmatprep.subr.bf16.mxu0 0
    %723 = vmatpush1.bf16.msra.mxu0 %v491
    %724 = vmatprep.subr.bf16.mxu0 0
    %725 = vmatpush2.bf16.msra.mxu0 %v506
    %726 = vmatprep.subr.bf16.mxu0 0
    %727 = vmatpush2.bf16.msra.mxu0 %v505
    %728 = vmatprep.subr.bf16.mxu0 0
    %729 = vmatpush2.bf16.msra.mxu0 %v504
    %730 = vmatprep.subr.bf16.mxu0 0
    %731 = vmatpush2.bf16.msra.mxu0 %v503
    %732 = vmatprep.subr.bf16.mxu0 0
    %733 = vmatpush2.bf16.msra.mxu0 %v502
    %734 = vmatprep.subr.bf16.mxu0 0
    %735 = vmatpush2.bf16.msra.mxu0 %v501
    %736 = vmatprep.subr.bf16.mxu0 0
    %737 = vmatpush2.bf16.msra.mxu0 %v500
    %738 = vmatprep.subr.bf16.mxu0 0
    %739 = vmatpush2.bf16.msra.mxu0 %v499
    %740 = vmatprep.mubr.bf16.mxu0 %v290
    %741 = vmatmul.mubr.bf16.gmra.mxu0 %v289
    %v742 = vpop.f32.mrf.mxu0
    %v743 = vadd.f32 %v298, %v742
    %v744 = vpop.f32.mrf.mxu0
    %v745 = vpop.f32.mrf.mxu0
    %v746 = vpop.f32.mrf.mxu0
    %747 = vdwg.mxu0
    %748 = vmatprep.subr.bf16.mxu0 0
    %749 = vmatpush1.bf16.msra.mxu0 %v514
    %750 = vmatprep.subr.bf16.mxu0 0
    %751 = vmatpush1.bf16.msra.mxu0 %v513
    %752 = vmatprep.subr.bf16.mxu0 0
    %753 = vmatpush1.bf16.msra.mxu0 %v512
    %754 = vmatprep.subr.bf16.mxu0 0
    %755 = vmatpush1.bf16.msra.mxu0 %v511
    %756 = vmatprep.subr.bf16.mxu0 0
    %757 = vmatpush1.bf16.msra.mxu0 %v510
    %758 = vmatprep.subr.bf16.mxu0 0
    %759 = vmatpush1.bf16.msra.mxu0 %v509
    %760 = vmatprep.subr.bf16.mxu0 0
    %761 = vmatpush1.bf16.msra.mxu0 %v508
    %762 = vmatprep.subr.bf16.mxu0 0
    %763 = vmatpush1.bf16.msra.mxu0 %v507
    %764 = vmatprep.subr.bf16.mxu0 0
    %765 = vmatpush2.bf16.msra.mxu0 %v522
    %766 = vmatprep.subr.bf16.mxu0 0
    %767 = vmatpush2.bf16.msra.mxu0 %v521
    %768 = vmatprep.subr.bf16.mxu0 0
    %769 = vmatpush2.bf16.msra.mxu0 %v520
    %770 = vmatprep.subr.bf16.mxu0 0
    %771 = vmatpush2.bf16.msra.mxu0 %v519
    %772 = vmatprep.subr.bf16.mxu0 0
    %773 = vmatpush2.bf16.msra.mxu0 %v518
    %774 = vmatprep.subr.bf16.mxu0 0
    %775 = vmatpush2.bf16.msra.mxu0 %v517
    %776 = vmatprep.subr.bf16.mxu0 0
    %777 = vmatpush2.bf16.msra.mxu0 %v516
    %778 = vmatprep.subr.bf16.mxu0 0
    %779 = vmatpush2.bf16.msra.mxu0 %v515
    %780 = vmatprep.mubr.bf16.mxu0 %v292
    %781 = vmatmul.mubr.bf16.gmra.mxu0 %v291
    %v782 = vpop.f32.mrf.mxu0
    %v783 = vadd.f32 %v743, %v782
    %v784 = vpop.f32.mrf.mxu0
    %v785 = vpop.f32.mrf.mxu0
    %v786 = vpop.f32.mrf.mxu0
    %787 = vdwg.mxu0
    %788 = vmatprep.subr.bf16.mxu0 0
    %789 = vmatpush1.bf16.msra.mxu0 %v530
    %790 = vmatprep.subr.bf16.mxu0 0
    %791 = vmatpush1.bf16.msra.mxu0 %v529
    %792 = vmatprep.subr.bf16.mxu0 0
    %793 = vmatpush1.bf16.msra.mxu0 %v528
    %794 = vmatprep.subr.bf16.mxu0 0
    %795 = vmatpush1.bf16.msra.mxu0 %v527
    %796 = vmatprep.subr.bf16.mxu0 0
    %797 = vmatpush1.bf16.msra.mxu0 %v526
    %798 = vmatprep.subr.bf16.mxu0 0
    %799 = vmatpush1.bf16.msra.mxu0 %v525
    %800 = vmatprep.subr.bf16.mxu0 0
    %801 = vmatpush1.bf16.msra.mxu0 %v524
    %802 = vmatprep.subr.bf16.mxu0 0
    %803 = vmatpush1.bf16.msra.mxu0 %v523
    %804 = vmatprep.subr.bf16.mxu0 0
    %805 = vmatpush2.bf16.msra.mxu0 %v538
    %806 = vmatprep.subr.bf16.mxu0 0
    %807 = vmatpush2.bf16.msra.mxu0 %v537
    %808 = vmatprep.subr.bf16.mxu0 0
    %809 = vmatpush2.bf16.msra.mxu0 %v536
    %810 = vmatprep.subr.bf16.mxu0 0
    %811 = vmatpush2.bf16.msra.mxu0 %v535
    %812 = vmatprep.subr.bf16.mxu0 0
    %813 = vmatpush2.bf16.msra.mxu0 %v534
    %814 = vmatprep.subr.bf16.mxu0 0
    %815 = vmatpush2.bf16.msra.mxu0 %v533
    %816 = vmatprep.subr.bf16.mxu0 0
    %817 = vmatpush2.bf16.msra.mxu0 %v532
    %818 = vmatprep.subr.bf16.mxu0 0
    %819 = vmatpush2.bf16.msra.mxu0 %v531
    %820 = vmatprep.mubr.bf16.mxu0 %v294
    %821 = vmatmul.mubr.bf16.gmra.mxu0 %v293
    %v822 = vpop.f32.mrf.mxu0
    %v823 = vadd.f32 %v783, %v822
    %v824 = vpop.f32.mrf.mxu0
    %v825 = vpop.f32.mrf.mxu0
    %v826 = vpop.f32.mrf.mxu0
    %827 = vdwg.mxu0
    %v828 = vmax.f32 %v823, 0.0
    %v829 = vpack.c.bf16 %v707, %v707
    %v830 = vpack.c.bf16 %v828, %v828
    %v847 = vunpack.c.l.b16 %v144
    %v848 = vunpack.c.l.b16 %v145
    %v849 = vunpack.c.l.b16 %v146
    %v850 = vunpack.c.l.b16 %v147
    %v851 = vunpack.c.l.b16 %v148
    %v852 = vunpack.c.l.b16 %v149
    %v853 = vunpack.c.l.b16 %v150
    %v854 = vunpack.c.l.b16 %v151
    %v855 = vunpack.c.l.b16 %v152
    %v856 = vunpack.c.l.b16 %v153
    %v857 = vunpack.c.l.b16 %v154
    %v858 = vunpack.c.l.b16 %v155
    %v859 = vunpack.c.l.b16 %v156
    %v860 = vunpack.c.l.b16 %v157
    %v861 = vunpack.c.l.b16 %v158
    %v862 = vunpack.c.l.b16 %v159
    %v863 = vpack.c.b16 %v848, %v847
    %v864 = vpack.c.b16 %v850, %v849
    %v865 = vpack.c.b16 %v852, %v851
    %v866 = vpack.c.b16 %v854, %v853
    %v867 = vpack.c.b16 %v856, %v855
    %v868 = vpack.c.b16 %v858, %v857
    %v869 = vpack.c.b16 %v860, %v859
    %v870 = vpack.c.b16 %v862, %v861
    %879 = vmatprep.subr.bf16.mxu0 0
    %880 = vmatpush1.bf16.msra.mxu0 %v870
    %881 = vmatprep.subr.bf16.mxu0 0
    %882 = vmatpush1.bf16.msra.mxu0 %v869
    %883 = vmatprep.subr.bf16.mxu0 0
    %884 = vmatpush1.bf16.msra.mxu0 %v868
    %885 = vmatprep.subr.bf16.mxu0 0
    %886 = vmatpush1.bf16.msra.mxu0 %v867
    %887 = vmatprep.subr.bf16.mxu0 0
    %888 = vmatpush1.bf16.msra.mxu0 %v866
    %889 = vmatprep.subr.bf16.mxu0 0
    %890 = vmatpush1.bf16.msra.mxu0 %v865
    %891 = vmatprep.subr.bf16.mxu0 0
    %892 = vmatpush1.bf16.msra.mxu0 %v864
    %893 = vmatprep.subr.bf16.mxu0 0
    %894 = vmatpush1.bf16.msra.mxu0 %v863
    %895 = vmatprep.subr.bf16.mxu0 0
    %896 = vmatpush2.bf16.msra.mxu0 0
    %897 = vmatprep.subr.bf16.mxu0 0
    %898 = vmatpush2.bf16.msra.mxu0 0
    %899 = vmatprep.subr.bf16.mxu0 0
    %900 = vmatpush2.bf16.msra.mxu0 0
    %901 = vmatprep.subr.bf16.mxu0 0
    %902 = vmatpush2.bf16.msra.mxu0 0
    %903 = vmatprep.subr.bf16.mxu0 0
    %904 = vmatpush2.bf16.msra.mxu0 0
    %905 = vmatprep.subr.bf16.mxu0 0
    %906 = vmatpush2.bf16.msra.mxu0 0
    %907 = vmatprep.subr.bf16.mxu0 0
    %908 = vmatpush2.bf16.msra.mxu0 0
    %909 = vmatprep.subr.bf16.mxu0 0
    %910 = vmatpush2.bf16.msra.mxu0 0
    %911 = vmatprep.mubr.bf16.mxu0 0
    %912 = vmatmul.mubr.bf16.gmra.mxu0 %v830
    %v913 = vpop.f32.mrf.mxu0
    %v914 = vadd.f32 0.0, %v913
    %v915 = vpop.f32.mrf.mxu0
    %v916 = vpop.f32.mrf.mxu0
    %v917 = vpop.f32.mrf.mxu0
    %918 = vdwg.mxu0
    %v935 = vunpack.c.l.b16 %v128
    %v936 = vunpack.c.l.b16 %v129
    %v937 = vunpack.c.l.b16 %v130
    %v938 = vunpack.c.l.b16 %v131
    %v939 = vunpack.c.l.b16 %v132
    %v940 = vunpack.c.l.b16 %v133
    %v941 = vunpack.c.l.b16 %v134
    %v942 = vunpack.c.l.b16 %v135
    %v943 = vunpack.c.l.b16 %v136
    %v944 = vunpack.c.l.b16 %v137
    %v945 = vunpack.c.l.b16 %v138
    %v946 = vunpack.c.l.b16 %v139
    %v947 = vunpack.c.l.b16 %v140
    %v948 = vunpack.c.l.b16 %v141
    %v949 = vunpack.c.l.b16 %v142
    %v950 = vunpack.c.l.b16 %v143
    %v951 = vpack.c.b16 %v936, %v935
    %v952 = vpack.c.b16 %v938, %v937
    %v953 = vpack.c.b16 %v940, %v939
    %v954 = vpack.c.b16 %v942, %v941
    %v955 = vpack.c.b16 %v944, %v943
    %v956 = vpack.c.b16 %v946, %v945
    %v957 = vpack.c.b16 %v948, %v947
    %v958 = vpack.c.b16 %v950, %v949
    %967 = vmatprep.subr.bf16.mxu0 0
    %968 = vmatpush1.bf16.msra.mxu0 %v958
    %969 = vmatprep.subr.bf16.mxu0 0
    %970 = vmatpush1.bf16.msra.mxu0 %v957
    %971 = vmatprep.subr.bf16.mxu0 0
    %972 = vmatpush1.bf16.msra.mxu0 %v956
    %973 = vmatprep.subr.bf16.mxu0 0
    %974 = vmatpush1.bf16.msra.mxu0 %v955
    %975 = vmatprep.subr.bf16.mxu0 0
    %976 = vmatpush1.bf16.msra.mxu0 %v954
    %977 = vmatprep.subr.bf16.mxu0 0
    %978 = vmatpush1.bf16.msra.mxu0 %v953
    %979 = vmatprep.subr.bf16.mxu0 0
    %980 = vmatpush1.bf16.msra.mxu0 %v952
    %981 = vmatprep.subr.bf16.mxu0 0
    %982 = vmatpush1.bf16.msra.mxu0 %v951
    %983 = vmatprep.subr.bf16.mxu0 0
    %984 = vmatpush2.bf16.msra.mxu0 0
    %985 = vmatprep.subr.bf16.mxu0 0
    %986 = vmatpush2.bf16.msra.mxu0 0
    %987 = vmatprep.subr.bf16.mxu0 0
    %988 = vmatpush2.bf16.msra.mxu0 0
    %989 = vmatprep.subr.bf16.mxu0 0
    %990 = vmatpush2.bf16.msra.mxu0 0
    %991 = vmatprep.subr.bf16.mxu0 0
    %992 = vmatpush2.bf16.msra.mxu0 0
    %993 = vmatprep.subr.bf16.mxu0 0
    %994 = vmatpush2.bf16.msra.mxu0 0
    %995 = vmatprep.subr.bf16.mxu0 0
    %996 = vmatpush2.bf16.msra.mxu0 0
    %997 = vmatprep.subr.bf16.mxu0 0
    %998 = vmatpush2.bf16.msra.mxu0 0
    %999 = vmatprep.mubr.bf16.mxu0 0
    %1000 = vmatmul.mubr.bf16.gmra.mxu0 %v829
    %v1001 = vpop.f32.mrf.mxu0
    %v1002 = vadd.f32 %v914, %v1001
    %v1003 = vpop.f32.mrf.mxu0
    %v1004 = vpop.f32.mrf.mxu0
    %v1005 = vpop.f32.mrf.mxu0
    %1006 = vdwg.mxu0
    %v1007 = vlaneseq
    %v1008 = vshrl.u32 %v1007, 7
    %v1009 = vsub.s32 0, %v1008
    %v1010 = vrot.slane %v209, %v1009
    %v1011 = vadd.f32 %v1002, %v1010
    %v1012 = vpack.c.bf16 %v1011, %v1011
    %v1013 = vlaneseq
    %v1014 = vshrl.u32 %v1013, 7
    %v1015 = vsub.s32 0, %v1014
    %v1016 = vrot.slane %v210, %v1015
    %v1033 = vunpack.c.l.b16 %v160
    %v1034 = vunpack.c.l.b16 %v161
    %v1035 = vunpack.c.l.b16 %v162
    %v1036 = vunpack.c.l.b16 %v163
    %v1037 = vunpack.c.l.b16 %v164
    %v1038 = vunpack.c.l.b16 %v165
    %v1039 = vunpack.c.l.b16 %v166
    %v1040 = vunpack.c.l.b16 %v167
    %v1041 = vunpack.c.l.b16 %v168
    %v1042 = vunpack.c.l.b16 %v169
    %v1043 = vunpack.c.l.b16 %v170
    %v1044 = vunpack.c.l.b16 %v171
    %v1045 = vunpack.c.l.b16 %v172
    %v1046 = vunpack.c.l.b16 %v173
    %v1047 = vunpack.c.l.b16 %v174
    %v1048 = vunpack.c.l.b16 %v175
    %v1049 = vpack.c.b16 %v1034, %v1033
    %v1050 = vpack.c.b16 %v1036, %v1035
    %v1051 = vpack.c.b16 %v1038, %v1037
    %v1052 = vpack.c.b16 %v1040, %v1039
    %v1053 = vpack.c.b16 %v1042, %v1041
    %v1054 = vpack.c.b16 %v1044, %v1043
    %v1055 = vpack.c.b16 %v1046, %v1045
    %v1056 = vpack.c.b16 %v1048, %v1047
    %1065 = vmatprep.subr.bf16.mxu0 0
    %1066 = vmatpush1.bf16.msra.mxu0 %v1056
    %1067 = vmatprep.subr.bf16.mxu0 0
    %1068 = vmatpush1.bf16.msra.mxu0 %v1055
    %1069 = vmatprep.subr.bf16.mxu0 0
    %1070 = vmatpush1.bf16.msra.mxu0 %v1054
    %1071 = vmatprep.subr.bf16.mxu0 0
    %1072 = vmatpush1.bf16.msra.mxu0 %v1053
    %1073 = vmatprep.subr.bf16.mxu0 0
    %1074 = vmatpush1.bf16.msra.mxu0 %v1052
    %1075 = vmatprep.subr.bf16.mxu0 0
    %1076 = vmatpush1.bf16.msra.mxu0 %v1051
    %1077 = vmatprep.subr.bf16.mxu0 0
    %1078 = vmatpush1.bf16.msra.mxu0 %v1050
    %1079 = vmatprep.subr.bf16.mxu0 0
    %1080 = vmatpush1.bf16.msra.mxu0 %v1049
    %1081 = vmatprep.subr.bf16.mxu0 0
    %1082 = vmatpush2.bf16.msra.mxu0 0
    %1083 = vmatprep.subr.bf16.mxu0 0
    %1084 = vmatpush2.bf16.msra.mxu0 0
    %1085 = vmatprep.subr.bf16.mxu0 0
    %1086 = vmatpush2.bf16.msra.mxu0 0
    %1087 = vmatprep.subr.bf16.mxu0 0
    %1088 = vmatpush2.bf16.msra.mxu0 0
    %1089 = vmatprep.subr.bf16.mxu0 0
    %1090 = vmatpush2.bf16.msra.mxu0 0
    %1091 = vmatprep.subr.bf16.mxu0 0
    %1092 = vmatpush2.bf16.msra.mxu0 0
    %1093 = vmatprep.subr.bf16.mxu0 0
    %1094 = vmatpush2.bf16.msra.mxu0 0
    %1095 = vmatprep.subr.bf16.mxu0 0
    %1096 = vmatpush2.bf16.msra.mxu0 0
    %1097 = vmatprep.mubr.bf16.mxu0 0
    %1098 = vmatmul.mubr.bf16.gmra.mxu0 %v1012
    %v1099 = vpop.f32.mrf.mxu0
    %v1100 = vadd.f32 %v1016, %v1099
    %v1101 = vpop.f32.mrf.mxu0
    %v1102 = vpop.f32.mrf.mxu0
    %v1103 = vpop.f32.mrf.mxu0
    %1104 = vdwg.mxu0
    %v1105 = vmax.f32 %v1100, 0.0
    %v1106 = vpack.c.bf16 %v1105, %v1105
    %v1107 = vlaneseq
    %v1108 = vshrl.u32 %v1107, 7
    %v1109 = vsub.s32 0, %v1108
    %v1110 = vrot.slane %v211, %v1109
    %v1127 = vunpack.c.l.b16 %v176
    %v1128 = vunpack.c.l.b16 %v177
    %v1129 = vunpack.c.l.b16 %v178
    %v1130 = vunpack.c.l.b16 %v179
    %v1131 = vunpack.c.l.b16 %v180
    %v1132 = vunpack.c.l.b16 %v181
    %v1133 = vunpack.c.l.b16 %v182
    %v1134 = vunpack.c.l.b16 %v183
    %v1135 = vunpack.c.l.b16 %v184
    %v1136 = vunpack.c.l.b16 %v185
    %v1137 = vunpack.c.l.b16 %v186
    %v1138 = vunpack.c.l.b16 %v187
    %v1139 = vunpack.c.l.b16 %v188
    %v1140 = vunpack.c.l.b16 %v189
    %v1141 = vunpack.c.l.b16 %v190
    %v1142 = vunpack.c.l.b16 %v191
    %v1143 = vpack.c.b16 %v1128, %v1127
    %v1144 = vpack.c.b16 %v1130, %v1129
    %v1145 = vpack.c.b16 %v1132, %v1131
    %v1146 = vpack.c.b16 %v1134, %v1133
    %v1147 = vpack.c.b16 %v1136, %v1135
    %v1148 = vpack.c.b16 %v1138, %v1137
    %v1149 = vpack.c.b16 %v1140, %v1139
    %v1150 = vpack.c.b16 %v1142, %v1141
    %1159 = vmatprep.subr.bf16.mxu0 0
    %1160 = vmatpush1.bf16.msra.mxu0 %v1150
    %1161 = vmatprep.subr.bf16.mxu0 0
    %1162 = vmatpush1.bf16.msra.mxu0 %v1149
    %1163 = vmatprep.subr.bf16.mxu0 0
    %1164 = vmatpush1.bf16.msra.mxu0 %v1148
    %1165 = vmatprep.subr.bf16.mxu0 0
    %1166 = vmatpush1.bf16.msra.mxu0 %v1147
    %1167 = vmatprep.subr.bf16.mxu0 0
    %1168 = vmatpush1.bf16.msra.mxu0 %v1146
    %1169 = vmatprep.subr.bf16.mxu0 0
    %1170 = vmatpush1.bf16.msra.mxu0 %v1145
    %1171 = vmatprep.subr.bf16.mxu0 0
    %1172 = vmatpush1.bf16.msra.mxu0 %v1144
    %1173 = vmatprep.subr.bf16.mxu0 0
    %1174 = vmatpush1.bf16.msra.mxu0 %v1143
    %1175 = vmatprep.subr.bf16.mxu0 0
    %1176 = vmatpush2.bf16.msra.mxu0 0
    %1177 = vmatprep.subr.bf16.mxu0 0
    %1178 = vmatpush2.bf16.msra.mxu0 0
    %1179 = vmatprep.subr.bf16.mxu0 0
    %1180 = vmatpush2.bf16.msra.mxu0 0
    %1181 = vmatprep.subr.bf16.mxu0 0
    %1182 = vmatpush2.bf16.msra.mxu0 0
    %1183 = vmatprep.subr.bf16.mxu0 0
    %1184 = vmatpush2.bf16.msra.mxu0 0
    %1185 = vmatprep.subr.bf16.mxu0 0
    %1186 = vmatpush2.bf16.msra.mxu0 0
    %1187 = vmatprep.subr.bf16.mxu0 0
    %1188 = vmatpush2.bf16.msra.mxu0 0
    %1189 = vmatprep.subr.bf16.mxu0 0
    %1190 = vmatpush2.bf16.msra.mxu0 0
    %1191 = vmatprep.mubr.bf16.mxu0 0
    %1192 = vmatmul.mubr.bf16.gmra.mxu0 %v1106
    %v1193 = vpop.f32.mrf.mxu0
    %v1194 = vadd.f32 %v1110, %v1193
    %v1195 = vpop.f32.mrf.mxu0
    %v1196 = vpop.f32.mrf.mxu0
    %v1197 = vpop.f32.mrf.mxu0
    %1198 = vdwg.mxu0
    %v1199 = vmax.f32 %v1194, 0.0
    %v1200 = vpack.c.bf16 %v1199, %v1199
    %v1201 = vlaneseq
    %v1202 = vshrl.u32 %v1201, 7
    %v1203 = vsub.s32 0, %v1202
    %v1204 = vrot.slane %v212, %v1203
    %v1221 = vunpack.c.l.b16 %v192
    %v1222 = vunpack.c.l.b16 %v193
    %v1223 = vunpack.c.l.b16 %v194
    %v1224 = vunpack.c.l.b16 %v195
    %v1225 = vunpack.c.l.b16 %v196
    %v1226 = vunpack.c.l.b16 %v197
    %v1227 = vunpack.c.l.b16 %v198
    %v1228 = vunpack.c.l.b16 %v199
    %v1229 = vunpack.c.l.b16 %v200
    %v1230 = vunpack.c.l.b16 %v201
    %v1231 = vunpack.c.l.b16 %v202
    %v1232 = vunpack.c.l.b16 %v203
    %v1233 = vunpack.c.l.b16 %v204
    %v1234 = vunpack.c.l.b16 %v205
    %v1235 = vunpack.c.l.b16 %v206
    %v1236 = vunpack.c.l.b16 %v207
    %v1237 = vpack.c.b16 %v1222, %v1221
    %v1238 = vpack.c.b16 %v1224, %v1223
    %v1239 = vpack.c.b16 %v1226, %v1225
    %v1240 = vpack.c.b16 %v1228, %v1227
    %v1241 = vpack.c.b16 %v1230, %v1229
    %v1242 = vpack.c.b16 %v1232, %v1231
    %v1243 = vpack.c.b16 %v1234, %v1233
    %v1244 = vpack.c.b16 %v1236, %v1235
    %1253 = vmatprep.subr.bf16.mxu0 0
    %1254 = vmatpush1.bf16.msra.mxu0 %v1244
    %1255 = vmatprep.subr.bf16.mxu0 0
    %1256 = vmatpush1.bf16.msra.mxu0 %v1243
    %1257 = vmatprep.subr.bf16.mxu0 0
    %1258 = vmatpush1.bf16.msra.mxu0 %v1242
    %1259 = vmatprep.subr.bf16.mxu0 0
    %1260 = vmatpush1.bf16.msra.mxu0 %v1241
    %1261 = vmatprep.subr.bf16.mxu0 0
    %1262 = vmatpush1.bf16.msra.mxu0 %v1240
    %1263 = vmatprep.subr.bf16.mxu0 0
    %1264 = vmatpush1.bf16.msra.mxu0 %v1239
    %1265 = vmatprep.subr.bf16.mxu0 0
    %1266 = vmatpush1.bf16.msra.mxu0 %v1238
    %1267 = vmatprep.subr.bf16.mxu0 0
    %1268 = vmatpush1.bf16.msra.mxu0 %v1237
    %1269 = vmatprep.subr.bf16.mxu0 0
    %1270 = vmatpush2.bf16.msra.mxu0 0
    %1271 = vmatprep.subr.bf16.mxu0 0
    %1272 = vmatpush2.bf16.msra.mxu0 0
    %1273 = vmatprep.subr.bf16.mxu0 0
    %1274 = vmatpush2.bf16.msra.mxu0 0
    %1275 = vmatprep.subr.bf16.mxu0 0
    %1276 = vmatpush2.bf16.msra.mxu0 0
    %1277 = vmatprep.subr.bf16.mxu0 0
    %1278 = vmatpush2.bf16.msra.mxu0 0
    %1279 = vmatprep.subr.bf16.mxu0 0
    %1280 = vmatpush2.bf16.msra.mxu0 0
    %1281 = vmatprep.subr.bf16.mxu0 0
    %1282 = vmatpush2.bf16.msra.mxu0 0
    %1283 = vmatprep.subr.bf16.mxu0 0
    %1284 = vmatpush2.bf16.msra.mxu0 0
    %1285 = vmatprep.mubr.bf16.mxu0 0
    %1286 = vmatmul.mubr.bf16.gmra.mxu0 %v1200
    %v1287 = vpop.f32.mrf.mxu0
    %v1288 = vadd.f32 %v1204, %v1287
    %v1289 = vpop.f32.mrf.mxu0
    %v1290 = vpop.f32.mrf.mxu0
    %v1291 = vpop.f32.mrf.mxu0
    %1292 = vdwg.mxu0
    %1293 = vst [vmem:[%s4] sm:$0x3] %v1288
    // Predicated region
    $region22: #{classifier_forward.1} parent=1 // pred_check
      _
    $region23: #{classifier_forward.1} parent=1 // pred_check_branch
      %1295 = sbr.rel (0) target = $region25
    $region24: #{classifier_forward.1} parent=1 // pred_region
      _
    $region25: #{classifier_forward.1} parent=1 // pred_fallthru
      _
    // Predicated region
    $region26: #{classifier_forward.1} parent=1 // pred_check
      _
    $region27: #{classifier_forward.1} parent=1 // pred_check_branch
      %1297 = sbr.rel (0) target = $region29
    $region28: #{classifier_forward.1} parent=1 // pred_region
      _
    $region29: #{classifier_forward.1} parent=1 // pred_fallthru
      _
    %1298 = vsyncpa [#allocation3], 1

</llo_original>
